<compile_context>
chip_gen: v7x
topology: tpu7x:2x2x1
jax: 0.10.0
libtpu: 0.0.40
codegen_flags: <defaults>
</compile_context>

<pallas_src>
import functools

import jax
import jax.numpy as jnp
from jax import lax
from jax.experimental import pallas as pl
from jax.experimental.pallas import tpu as pltpu

BN_EPS = 1e-5
_MIB = 1024 * 1024
_VMEM_BUDGET = 40 * _MIB   # conservative across v5e/v6e (128 MiB) and v7x (64 MiB)
_VMEM_CAP = 56 * _MIB


def _round_up(a, b):
    return (a + b - 1) // b * b


def _keep_mask(shape, row_offset, seed, drop_rate):
    """Deterministic per-(global row, col) keep mask via a counter-based hash.

    Pure 32-bit integer VPU ops (mul/xor/shift), so it lowers on TPU Mosaic and
    in interpret mode alike.
    # TODO(synk): dropout RNG stream cannot bit-match torch's RNG; the semantics
    #             (zero w.p. p, rescale by 1/(1-p)) are preserved.
    """
    r = (lax.broadcasted_iota(jnp.int32, shape, 0) + row_offset).astype(jnp.uint32)
    c = lax.broadcasted_iota(jnp.int32, shape, 1).astype(jnp.uint32)
    x = (r * jnp.uint32(0x9E3779B1)) ^ (c * jnp.uint32(0x85EBCA77))
    x = x + jnp.uint32(seed & 0xFFFFFFFF)
    x = x ^ (x >> 16)
    x = x * jnp.uint32(0x7FEB352D)
    x = x ^ (x >> 15)
    x = x * jnp.uint32(0x846CA68B)
    x = x ^ (x >> 16)
    thresh = min(int(round(float(drop_rate) * 4294967296.0)), 4294967295)
    return x >= jnp.uint32(thresh)


def _fused_kernel(x_ref, w1_ref, gamma_ref, beta_ref, w2_ref, b2_ref, out_ref,
                  *, n_rows, drop_rate, seed):
    """Single-pass path: whole (padded) batch resident in VMEM."""
    # bf16 x bf16 -> f32 on the MXU; zero-padded rows/cols contribute 0 (b1 elided).
    h = jnp.dot(x_ref[...], w1_ref[...], preferred_element_type=jnp.float32)
    inv_n = 1.0 / n_rows                              # true (unpadded) batch size
    mean = jnp.sum(h, axis=0, keepdims=True) * inv_n
    var = jnp.maximum(jnp.sum(h * h, axis=0, keepdims=True) * inv_n - mean * mean, 0.0)
    scale = gamma_ref[...] * lax.rsqrt(var + BN_EPS)
    shift = beta_ref[...] - mean * scale
    h = jnp.maximum(h * scale + shift, 0.0)           # folded train-mode BN + ReLU
    if drop_rate > 0.0:
        keep = _keep_mask(h.shape, 0, seed, drop_rate)
        h = jnp.where(keep, h, 0.0)                   # 1/(1-p) folded into W2
    out_ref[...] = (jnp.dot(h.astype(jnp.bfloat16), w2_ref[...],
                            preferred_element_type=jnp.float32)
                    + b2_ref[...]).astype(out_ref.dtype)


def _stats_kernel(x_ref, w1_ref, sum_ref, sumsq_ref):
    """Tiled pass 1: accumulate per-feature batch sum / sum-of-squares."""
    @pl.when(pl.program_id(0) == 0)
    def _init():
        sum_ref[...] = jnp.zeros_like(sum_ref)
        sumsq_ref[...] = jnp.zeros_like(sumsq_ref)

    h = jnp.dot(x_ref[...], w1_ref[...], preferred_element_type=jnp.float32)
    sum_ref[...] += jnp.sum(h, axis=0, keepdims=True)
    sumsq_ref[...] += jnp.sum(h * h, axis=0, keepdims=True)


def _apply_kernel(x_ref, w1_ref, scale_ref, shift_ref, w2_ref, b2_ref, out_ref,
                  *, tm, drop_rate, seed):
    """Tiled pass 2: folded BN + ReLU + dropout + decoder matmul (tiles independent)."""
    h = jnp.dot(x_ref[...], w1_ref[...], preferred_element_type=jnp.float32)
    h = jnp.maximum(h * scale_ref[...] + shift_ref[...], 0.0)
    if drop_rate > 0.0:
        keep = _keep_mask(h.shape, pl.program_id(0) * tm, seed, drop_rate)
        h = jnp.where(keep, h, 0.0)
    out_ref[...] = (jnp.dot(h.astype(jnp.bfloat16), w2_ref[...],
                            preferred_element_type=jnp.float32)
                    + b2_ref[...]).astype(out_ref.dtype)


def autoencoder_forward(x, params, drop_rate, seed=0, *, row_tile=None,
                        max_single_pass_rows=None):
    """x: (N, input_dim) f32; returns (N, input_dim) f32. Training-mode forward."""
    n, input_dim = x.shape
    output_dim = params["w1"].shape[0]

    # Lane-dense padding: feature dims -> multiples of 128; rows -> multiples of 16
    # (bf16 native (16,128) tile).
    d_in_p = _round_up(input_dim, 128)
    d_h_p = _round_up(output_dim, 128)
    n16 = _round_up(n, 16)

    inv_keep = 1.0 / (1.0 - drop_rate) if drop_rate > 0.0 else 1.0

    w1_t = jnp.zeros((d_in_p, d_h_p), jnp.bfloat16).at[:input_dim, :output_dim].set(
        params["w1"].T.astype(jnp.bfloat16))
    # Dropout's 1/(1-p) rescale folded into the decoder weights (bias left unscaled).
    w2_t = jnp.zeros((d_h_p, d_in_p), jnp.bfloat16).at[:output_dim, :input_dim].set(
        (params["w2"].T * inv_keep).astype(jnp.bfloat16))
    gamma = jnp.zeros((1, d_h_p), jnp.float32).at[0, :output_dim].set(params["gamma"])
    beta = jnp.zeros((1, d_h_p), jnp.float32).at[0, :output_dim].set(params["beta"])
    b2 = jnp.zeros((1, d_in_p), jnp.float32).at[0, :input_dim].set(params["b2"])
    # Note: b1 is intentionally unused -- it cancels exactly under training-mode BN.

    w_bytes = 2 * d_in_p * d_h_p * 2                              # W1 + W2 in bf16
    per_row_single = 2 * d_in_p + 4 * d_in_p + 2 * 4 * d_h_p     # x + out + h/temps
    if max_single_pass_rows is None:
        max_single_pass_rows = max(
            0, min(4096, ((_VMEM_BUDGET - w_bytes) // per_row_single // 16) * 16))

    if n16 <= max_single_pass_rows:
        # Single pass: one x stream, one encoder matmul, h never leaves VMEM.
        n_pad = n16
        x_p = jnp.zeros((n_pad, d_in_p), jnp.bfloat16).at[:n, :input_dim].set(
            x.astype(jnp.bfloat16))
        kernel = functools.partial(_fused_kernel, n_rows=float(n),
                                   drop_rate=float(drop_rate), seed=int(seed))
        vmem_limit = int(min(_VMEM_CAP, w_bytes + n_pad * per_row_single + 8 * _MIB))
        out_padded = pl.pallas_call(
            kernel,
            out_shape=jax.ShapeDtypeStruct((n_pad, d_in_p), jnp.float32),
            compiler_params=pltpu.CompilerParams(vmem_limit_bytes=vmem_limit),
        )(x_p, w1_t, gamma, beta, w2_t, b2)
        return out_padded[:n, :input_dim]

    # ---- Tiled two-call path for large batches ----
    # Per-row pipeline bytes: double-buffered x (bf16) + double-buffered out (f32)
    # + f32 h/temps; weights counted twice (default double-buffering, conservative).
    per_row_tiled = 2 * (2 * d_in_p) + 2 * (4 * d_in_p) + 2 * (4 * d_h_p)
    if row_tile is None:
        tm = ((_VMEM_BUDGET - 2 * w_bytes) // per_row_tiled // 16) * 16
        tm = max(16, min(2048, tm))
    else:
        tm = max(16, _round_up(row_tile, 16))
    tm = min(tm, n16)
    n_pad = _round_up(n, tm)
    num_tiles = n_pad // tm
    vmem_limit = int(min(_VMEM_CAP, 2 * w_bytes + tm * per_row_tiled + 8 * _MIB))

    x_p = jnp.zeros((n_pad, d_in_p), jnp.bfloat16).at[:n, :input_dim].set(
        x.astype(jnp.bfloat16))

    # Pass 1: batch statistics (resident accumulator outputs; zero-padded rows add 0).
    # TODO(synk): row axis stays "arbitrary" (shared accumulator); a v7x megacore
    #             split would need per-core partials + a cross-core reduce.
    h_sum, h_sumsq = pl.pallas_call(
        _stats_kernel,
        out_shape=(jax.ShapeDtypeStruct((1, d_h_p), jnp.float32),
                   jax.ShapeDtypeStruct((1, d_h_p), jnp.float32)),
        grid=(num_tiles,),
        in_specs=[pl.BlockSpec((tm, d_in_p), lambda i: (i, 0)),
                  pl.BlockSpec((d_in_p, d_h_p), lambda i: (0, 0))],
        out_specs=(pl.BlockSpec((1, d_h_p), lambda i: (0, 0)),
                   pl.BlockSpec((1, d_h_p), lambda i: (0, 0))),
        compiler_params=pltpu.CompilerParams(
            dimension_semantics=("arbitrary",), vmem_limit_bytes=vmem_limit),
    )(x_p, w1_t)

    # Fold BN stats into scale/shift -- tiny (1, d_h) op in plain JAX.
    inv_n = 1.0 / float(n)
    mean = h_sum * inv_n
    var = jnp.maximum(h_sumsq * inv_n - mean * mean, 0.0)
    scale = gamma * lax.rsqrt(var + BN_EPS)
    shift = beta - mean * scale

    # Pass 2: normalize + ReLU + dropout + decode; row tiles fully independent.
    kernel = functools.partial(_apply_kernel, tm=tm,
                               drop_rate=float(drop_rate), seed=int(seed))
    out_padded = pl.pallas_call(
        kernel,
        out_shape=jax.ShapeDtypeStruct((n_pad, d_in_p), jnp.float32),
        grid=(num_tiles,),
        in_specs=[pl.BlockSpec((tm, d_in_p), lambda i: (i, 0)),
                  pl.BlockSpec((d_in_p, d_h_p), lambda i: (0, 0)),
                  pl.BlockSpec((1, d_h_p), lambda i: (0, 0)),
                  pl.BlockSpec((1, d_h_p), lambda i: (0, 0)),
                  pl.BlockSpec((d_h_p, d_in_p), lambda i: (0, 0)),
                  pl.BlockSpec((1, d_in_p), lambda i: (0, 0))],
        out_specs=pl.BlockSpec((tm, d_in_p), lambda i: (i, 0)),
        compiler_params=pltpu.CompilerParams(
            dimension_semantics=("parallel",), vmem_limit_bytes=vmem_limit),
    )(x_p, w1_t, scale, shift, w2_t, b2)

    return out_padded[:n, :input_dim]


def reference_forward(x, params):
    """Pure-JAX f32 reference (dropout disabled), training-mode BatchNorm."""
    h = x @ params["w1"].T + params["b1"]
    mean = jnp.mean(h, axis=0, keepdims=True)
    var = jnp.mean((h - mean) ** 2, axis=0, keepdims=True)
    h = (h - mean) * lax.rsqrt(var + BN_EPS)
    h = h * params["gamma"] + params["beta"]
    h = jnp.maximum(h, 0.0)
    return h @ params["w2"].T + params["b2"]


if __name__ == "__main__":
    key = jax.random.PRNGKey(0)
    batch, input_dim, output_dim, drop_rate = 8, 32, 16, 0.25
    k = jax.random.split(key, 6)

    x = jax.random.normal(k[0], (batch, input_dim), jnp.float32)

    # Deterministic PyTorch-style init: U(-1/sqrt(fan_in), 1/sqrt(fan_in)), BN gamma=1/beta=0.
    lim1 = input_dim ** -0.5
    lim2 = output_dim ** -0.5
    params = {
        "w1": jax.random.uniform(k[1], (output_dim, input_dim), jnp.float32, -lim1, lim1),
        "b1": jax.random.uniform(k[2], (output_dim,), jnp.float32, -lim1, lim1),
        "gamma": jnp.ones((output_dim,), jnp.float32),
        "beta": jnp.zeros((output_dim,), jnp.float32),
        "w2": jax.random.uniform(k[3], (input_dim, output_dim), jnp.float32, -lim2, lim2),
        "b2": jax.random.uniform(k[4], (input_dim,), jnp.float32, -lim2, lim2),
    }

    # Primary call: training-mode forward with dropout (single-pass VMEM-resident path).
    out = autoencoder_forward(x, params, drop_rate, seed=1234)
    jax.block_until_ready(out)
    assert out.shape == (batch, input_dim) and out.dtype == jnp.float32
    assert bool(jnp.all(jnp.isfinite(out)))

    # Correctness vs pure-JAX reference with dropout disabled (bf16 matmul tolerance).
    ref = reference_forward(x, params)
    out_nodrop = autoencoder_forward(x, params, 0.0)
    jax.block_until_ready(out_nodrop)
    err1 = float(jnp.max(jnp.abs(out_nodrop - ref)))
    assert err1 < 1e-1, f"single-pass max abs error vs reference: {err1}"

    # Exercise the tiled (stats + apply) path with a forced small row tile.
    x2 = jax.random.normal(k[5], (48, input_dim), jnp.float32)
    ref2 = reference_forward(x2, params)
    out2 = autoencoder_forward(x2, params, 0.0, row_tile=16, max_single_pass_rows=0)
    jax.block_until_ready(out2)
    err2 = float(jnp.max(jnp.abs(out2 - ref2)))
    assert err2 < 1e-1, f"tiled-path max abs error vs reference: {err2}"

    print("KERNEL_OK")
</pallas_src>

<mosaic_0001>
module attributes {stable_mosaic.version = 11 : i64} {
  func.func @_fused_kernel(%arg0: memref<16x128xbf16, #tpu.memory_space<vmem>>, %arg1: memref<128x128xbf16, #tpu.memory_space<vmem>>, %arg2: memref<1x128xf32, #tpu.memory_space<vmem>>, %arg3: memref<1x128xf32, #tpu.memory_space<vmem>>, %arg4: memref<128x128xbf16, #tpu.memory_space<vmem>>, %arg5: memref<1x128xf32, #tpu.memory_space<vmem>>, %arg6: memref<16x128xf32, #tpu.memory_space<vmem>>) attributes {dimension_semantics = [], scalar_prefetch = 0 : i64, scratch_operands = 0 : i64, tpu.core_type = #tpu.core_type<tc>} {
    %c0 = arith.constant 0 : index
    %c0_0 = arith.constant 0 : index
    %0 = vector.load %arg0[%c0, %c0_0] : memref<16x128xbf16, #tpu.memory_space<vmem>>, vector<16x128xbf16>
    %c0_1 = arith.constant 0 : index
    %c0_2 = arith.constant 0 : index
    %1 = vector.load %arg1[%c0_1, %c0_2] : memref<128x128xbf16, #tpu.memory_space<vmem>>, vector<128x128xbf16>
    %cst = arith.constant dense<0.000000e+00> : vector<16x128xf32>
    %2 = tpu.matmul %0, %1, %cst {dimension_numbers = #tpu.dot_dimension_numbers<[1], [0], [0], [1], [0, 0, 1, 1], [], []>} : vector<16x128xbf16>, vector<128x128xbf16>, vector<16x128xf32> -> vector<16x128xf32>
    %cst_3 = arith.constant dense<0.000000e+00> : vector<128xf32>
    %3 = vector.multi_reduction <add>, %2, %cst_3 [0] : vector<16x128xf32> to vector<128xf32>
    %4 = vector.shape_cast %3 : vector<128xf32> to vector<1x128xf32>
    %cst_4 = arith.constant 1.250000e-01 : f32
    %5 = vector.broadcast %cst_4 : f32 to vector<1x128xf32>
    %6 = arith.mulf %4, %5 : vector<1x128xf32>
    %7 = arith.mulf %2, %2 : vector<16x128xf32>
    %cst_5 = arith.constant dense<0.000000e+00> : vector<128xf32>
    %8 = vector.multi_reduction <add>, %7, %cst_5 [0] : vector<16x128xf32> to vector<128xf32>
    %9 = vector.shape_cast %8 : vector<128xf32> to vector<1x128xf32>
    %cst_6 = arith.constant 1.250000e-01 : f32
    %10 = vector.broadcast %cst_6 : f32 to vector<1x128xf32>
    %11 = arith.mulf %9, %10 : vector<1x128xf32>
    %12 = arith.mulf %6, %6 : vector<1x128xf32>
    %13 = arith.subf %11, %12 : vector<1x128xf32>
    %cst_7 = arith.constant 0.000000e+00 : f32
    %14 = vector.broadcast %cst_7 : f32 to vector<1x128xf32>
    %15 = arith.maximumf %13, %14 : vector<1x128xf32>
    %c0_8 = arith.constant 0 : index
    %c0_9 = arith.constant 0 : index
    %16 = vector.load %arg2[%c0_8, %c0_9] : memref<1x128xf32, #tpu.memory_space<vmem>>, vector<1x128xf32>
    %cst_10 = arith.constant 9.99999974E-6 : f32
    %17 = vector.broadcast %cst_10 : f32 to vector<1x128xf32>
    %18 = arith.addf %15, %17 : vector<1x128xf32>
    %19 = math.rsqrt %18 : vector<1x128xf32>
    %20 = arith.mulf %16, %19 : vector<1x128xf32>
    %c0_11 = arith.constant 0 : index
    %c0_12 = arith.constant 0 : index
    %21 = vector.load %arg3[%c0_11, %c0_12] : memref<1x128xf32, #tpu.memory_space<vmem>>, vector<1x128xf32>
    %22 = arith.mulf %6, %20 : vector<1x128xf32>
    %23 = arith.subf %21, %22 : vector<1x128xf32>
    %24 = vector.broadcast %20 : vector<1x128xf32> to vector<16x128xf32>
    %25 = arith.mulf %2, %24 : vector<16x128xf32>
    %26 = vector.broadcast %23 : vector<1x128xf32> to vector<16x128xf32>
    %27 = arith.addf %25, %26 : vector<16x128xf32>
    %cst_13 = arith.constant 0.000000e+00 : f32
    %28 = vector.broadcast %cst_13 : f32 to vector<16x128xf32>
    %29 = arith.maximumf %27, %28 : vector<16x128xf32>
    %30 = tpu.iota {dimensions = array<i32: 0>} : vector<16x128xi32>
    %c0_i32 = arith.constant 0 : i32
    %31 = vector.broadcast %c0_i32 : i32 to vector<16x128xi32>
    %32 = arith.addi %30, %31 : vector<16x128xi32>
    %33 = tpu.iota {dimensions = array<i32: 1>} : vector<16x128xi32>
    %c-1640531535_i32 = arith.constant -1640531535 : i32
    %34 = vector.broadcast %c-1640531535_i32 : i32 to vector<16x128xi32>
    %35 = arith.muli %32, %34 : vector<16x128xi32>
    %c-2048144777_i32 = arith.constant -2048144777 : i32
    %36 = vector.broadcast %c-2048144777_i32 : i32 to vector<16x128xi32>
    %37 = arith.muli %33, %36 : vector<16x128xi32>
    %38 = arith.xori %35, %37 : vector<16x128xi32>
    %c1234_i32 = arith.constant 1234 : i32
    %39 = vector.broadcast %c1234_i32 : i32 to vector<16x128xi32>
    %40 = arith.addi %38, %39 : vector<16x128xi32>
    %c16_i32 = arith.constant 16 : i32
    %41 = vector.broadcast %c16_i32 : i32 to vector<16x128xi32>
    %42 = arith.shrui %40, %41 : vector<16x128xi32>
    %43 = arith.xori %40, %42 : vector<16x128xi32>
    %c2146121005_i32 = arith.constant 2146121005 : i32
    %44 = vector.broadcast %c2146121005_i32 : i32 to vector<16x128xi32>
    %45 = arith.muli %43, %44 : vector<16x128xi32>
    %c15_i32 = arith.constant 15 : i32
    %46 = vector.broadcast %c15_i32 : i32 to vector<16x128xi32>
    %47 = arith.shrui %45, %46 : vector<16x128xi32>
    %48 = arith.xori %45, %47 : vector<16x128xi32>
    %c-2073254261_i32 = arith.constant -2073254261 : i32
    %49 = vector.broadcast %c-2073254261_i32 : i32 to vector<16x128xi32>
    %50 = arith.muli %48, %49 : vector<16x128xi32>
    %c16_i32_14 = arith.constant 16 : i32
    %51 = vector.broadcast %c16_i32_14 : i32 to vector<16x128xi32>
    %52 = arith.shrui %50, %51 : vector<16x128xi32>
    %53 = arith.xori %50, %52 : vector<16x128xi32>
    %c1073741824_i32 = arith.constant 1073741824 : i32
    %54 = vector.broadcast %c1073741824_i32 : i32 to vector<16x128xi32>
    %55 = arith.cmpi uge, %53, %54 : vector<16x128xi32>
    %cst_15 = arith.constant 0.000000e+00 : f32
    %56 = vector.broadcast %cst_15 : f32 to vector<16x128xf32>
    %57 = arith.select %55, %29, %56 : vector<16x128xi1>, vector<16x128xf32>
    %58 = arith.truncf %57 : vector<16x128xf32> to vector<16x128xbf16>
    %c0_16 = arith.constant 0 : index
    %c0_17 = arith.constant 0 : index
    %59 = vector.load %arg4[%c0_16, %c0_17] : memref<128x128xbf16, #tpu.memory_space<vmem>>, vector<128x128xbf16>
    %cst_18 = arith.constant dense<0.000000e+00> : vector<16x128xf32>
    %60 = tpu.matmul %58, %59, %cst_18 {dimension_numbers = #tpu.dot_dimension_numbers<[1], [0], [0], [1], [0, 0, 1, 1], [], []>} : vector<16x128xbf16>, vector<128x128xbf16>, vector<16x128xf32> -> vector<16x128xf32>
    %c0_19 = arith.constant 0 : index
    %c0_20 = arith.constant 0 : index
    %61 = vector.load %arg5[%c0_19, %c0_20] : memref<1x128xf32, #tpu.memory_space<vmem>>, vector<1x128xf32>
    %62 = vector.broadcast %61 : vector<1x128xf32> to vector<16x128xf32>
    %63 = arith.addf %60, %62 : vector<16x128xf32>
    %c0_21 = arith.constant 0 : index
    %c0_22 = arith.constant 0 : index
    %64 = vector.load %arg6[%c0_21, %c0_22] : memref<16x128xf32, #tpu.memory_space<vmem>>, vector<16x128xf32>
    tpu.vector_store %arg6[%c0_21, %c0_22], %63 {strides = array<i32>} : memref<16x128xf32, #tpu.memory_space<vmem>>, vector<16x128xf32>,
    return
  }
}

</mosaic_0001>

<llo_original>
// kernel: tpu_custom_call.1
$region0: #{tpu_custom_call.1}
  #allocation0 [shape = 'u32[]', space=smem, size = 0x4, offset = 0x4, fixed_abs, tag = 'smem constant byte address 0x4 - core index']
  #allocation1 [shape = 'u32[144,128]{1,0:T(1,128)}', space=vmem, size = 0x12000, scoped, tag = 'internal scratch']
  %s0 = inlined_call_operand.hbm [shape: bf16[16,128], index: 0, kind: input, shape index: {}]
  %s1 = inlined_call_operand.hbm [shape: bf16[128,128], index: 1, kind: input, shape index: {}]
  %s2 = inlined_call_operand.vmem [shape: f32[1,128], index: 2, kind: input, shape index: {}]
  %s3 = inlined_call_operand.vmem [shape: f32[1,128], index: 3, kind: input, shape index: {}]
  %s4 = inlined_call_operand.hbm [shape: bf16[128,128], index: 4, kind: input, shape index: {}]
  %s5 = inlined_call_operand.vmem [shape: f32[1,128], index: 5, kind: input, shape index: {}]
  %s6 = inlined_call_operand.hbm [shape: f32[16,128], index: 6, kind: output, shape index: {}]
  %s7 = sld [smem:[#allocation0]]
  $region46: #{tpu_custom_call.1} parent=0
    _
  %s9 = ssub.s32 1, %s7
  %s10 = scalar_select 0, %s9, %s7
  $region1: #{tpu_custom_call.1} parent=0
    #allocation2 [shape = 'u8[4096]{0}', space=vmem, size = 0x1000, scoped, tag = 'input window, operand 0, single buffered']
    #allocation3 [shape = 's32[1]{0}', space=sflag, size = 0x4, scoped, tag = 'scoped memory for tpu_custom_call.1']
    #allocation4 [shape = 's32[1]{0}', space=sflag, size = 0x4, scoped, tag = 'scoped memory for tpu_custom_call.1']
    #allocation5 [shape = 'u8[32768]{0}', space=vmem, size = 0x8000, scoped, tag = 'input window, operand 1, single buffered']
    #allocation6 [shape = 's32[1]{0}', space=sflag, size = 0x4, scoped, tag = 'scoped memory for tpu_custom_call.1']
    #allocation7 [shape = 'u8[32768]{0}', space=vmem, size = 0x8000, scoped, tag = 'input window, operand 4, single buffered']
    #allocation8 [shape = 'u8[8192]{0}', space=vmem, size = 0x2000, scoped, tag = 'output window, operand 0, single buffered']
    %11 = vsyncpa [#allocation3], 0
    %12 = vsyncpa [#allocation6], 0
    %13 = vsyncpa [#allocation4], 0
    // Predicated region
    $region2: #{tpu_custom_call.1} parent=1 // pred_check
      _
    $region3: #{tpu_custom_call.1} parent=1 // pred_check_branch
      %15 = sbr.rel (0) target = $region5
    $region4: #{tpu_custom_call.1} parent=1 // pred_region
      %s17 = ssub.s32 128, 128
      %18 = vsyncadd [#allocation3], %s17
      %s19 = sshll.u32 [#allocation2], 4
      %s20 = int_to_ptr.vmem [resolvable:$true] %s19
      %25 = dma.hbm_to_vmem [thread:$0]  %s0, 128, %s20, [#allocation3], 64, 64, 4
    $region5: #{tpu_custom_call.1} parent=1 // pred_fallthru
      _
    // Predicated region
    $region6: #{tpu_custom_call.1} parent=1 // pred_check
      _
    $region7: #{tpu_custom_call.1} parent=1 // pred_check_branch
      %27 = sbr.rel (0) target = $region9
    $region8: #{tpu_custom_call.1} parent=1 // pred_region
      %s29 = ssub.s32 1024, 1024
      %30 = vsyncadd [#allocation6], %s29
      %s31 = sshll.u32 [#allocation5], 4
      %s32 = int_to_ptr.vmem [resolvable:$true] %s31
      %37 = dma.hbm_to_vmem [thread:$0]  %s1, 1024, %s32, [#allocation6], 64, 64, 4
    $region9: #{tpu_custom_call.1} parent=1 // pred_fallthru
      _
    // Predicated region
    $region10: #{tpu_custom_call.1} parent=1 // pred_check
      _
    $region11: #{tpu_custom_call.1} parent=1 // pred_check_branch
      %39 = sbr.rel (0) target = $region13
    $region12: #{tpu_custom_call.1} parent=1 // pred_region
      _
    $region13: #{tpu_custom_call.1} parent=1 // pred_fallthru
      _
    // Predicated region
    $region14: #{tpu_custom_call.1} parent=1 // pred_check
      _
    $region15: #{tpu_custom_call.1} parent=1 // pred_check_branch
      %41 = sbr.rel (0) target = $region17
    $region16: #{tpu_custom_call.1} parent=1 // pred_region
      _
    $region17: #{tpu_custom_call.1} parent=1 // pred_fallthru
      _
    // Predicated region
    $region18: #{tpu_custom_call.1} parent=1 // pred_check
      _
    $region19: #{tpu_custom_call.1} parent=1 // pred_check_branch
      %43 = sbr.rel (0) target = $region21
    $region20: #{tpu_custom_call.1} parent=1 // pred_region
      %s45 = ssub.s32 1024, 1024
      %46 = vsyncadd [#allocation6], %s45
      %s47 = sshll.u32 [#allocation7], 4
      %s48 = int_to_ptr.vmem [resolvable:$true] %s47
      %53 = dma.hbm_to_vmem [thread:$0]  %s4, 1024, %s48, [#allocation6], 64, 64, 4
    $region21: #{tpu_custom_call.1} parent=1 // pred_fallthru
      _
    // Predicated region
    $region22: #{tpu_custom_call.1} parent=1 // pred_check
      _
    $region23: #{tpu_custom_call.1} parent=1 // pred_check_branch
      %55 = sbr.rel (0) target = $region25
    $region24: #{tpu_custom_call.1} parent=1 // pred_region
      _
    $region25: #{tpu_custom_call.1} parent=1 // pred_fallthru
      _
    // Predicated region
    $region26: #{tpu_custom_call.1} parent=1 // pred_check
      _
    $region27: #{tpu_custom_call.1} parent=1 // pred_check_branch
      %57 = sbr.rel (0) target = $region29
    $region28: #{tpu_custom_call.1} parent=1 // pred_region
      %58 = dma.done [#allocation3], 128
    $region29: #{tpu_custom_call.1} parent=1 // pred_fallthru
      _
    // Predicated region
    $region30: #{tpu_custom_call.1} parent=1 // pred_check
      _
    $region31: #{tpu_custom_call.1} parent=1 // pred_check_branch
      %60 = sbr.rel (0) target = $region33
    $region32: #{tpu_custom_call.1} parent=1 // pred_region
      %61 = dma.done [#allocation6], 1024
    $region33: #{tpu_custom_call.1} parent=1 // pred_fallthru
      _
    // Predicated region
    $region34: #{tpu_custom_call.1} parent=1 // pred_check
      _
    $region35: #{tpu_custom_call.1} parent=1 // pred_check_branch
      %63 = sbr.rel (0) target = $region37
    $region36: #{tpu_custom_call.1} parent=1 // pred_region
      %64 = dma.done [#allocation6], 1024
    $region37: #{tpu_custom_call.1} parent=1 // pred_fallthru
      _
    %v66 = vld [vmem:[#allocation2] sm:$0xf]
    %v67 = vld [vmem:[#allocation2 + $0x4] sm:$0xf]
    %v68 = vld [vmem:[#allocation5] sm:$0xf]
    %v69 = vld [vmem:[#allocation5 + $0x4] sm:$0xf]
    %v70 = vld [vmem:[#allocation5 + $0x8] sm:$0xf]
    %v71 = vld [vmem:[#allocation5 + $0xc] sm:$0xf]
    %v72 = vld [vmem:[#allocation5 + $0x10] sm:$0xf]
    %v73 = vld [vmem:[#allocation5 + $0x14] sm:$0xf]
    %v74 = vld [vmem:[#allocation5 + $0x18] sm:$0xf]
    %v75 = vld [vmem:[#allocation5 + $0x1c] sm:$0xf]
    %v76 = vld [vmem:[#allocation5 + $0x20] sm:$0xf]
    %v77 = vld [vmem:[#allocation5 + $0x24] sm:$0xf]
    %v78 = vld [vmem:[#allocation5 + $0x28] sm:$0xf]
    %v79 = vld [vmem:[#allocation5 + $0x2c] sm:$0xf]
    %v80 = vld [vmem:[#allocation5 + $0x30] sm:$0xf]
    %v81 = vld [vmem:[#allocation5 + $0x34] sm:$0xf]
    %v82 = vld [vmem:[#allocation5 + $0x38] sm:$0xf]
    %v83 = vld [vmem:[#allocation5 + $0x3c] sm:$0xf]
    %v86 = vunpack.c.l.b16 %v66
    %v87 = vunpack.c.l.b16 %v67
    %v88 = vpack.c.b16 %v87, %v86
    %v106 = vunpack.c.l.b16 %v68
    %v107 = vunpack.c.l.b16 %v69
    %v108 = vunpack.c.l.b16 %v70
    %v109 = vunpack.c.l.b16 %v71
    %v110 = vunpack.c.l.b16 %v72
    %v111 = vunpack.c.l.b16 %v73
    %v112 = vunpack.c.l.b16 %v74
    %v113 = vunpack.c.l.b16 %v75
    %v114 = vunpack.c.l.b16 %v76
    %v115 = vunpack.c.l.b16 %v77
    %v116 = vunpack.c.l.b16 %v78
    %v117 = vunpack.c.l.b16 %v79
    %v118 = vunpack.c.l.b16 %v80
    %v119 = vunpack.c.l.b16 %v81
    %v120 = vunpack.c.l.b16 %v82
    %v121 = vunpack.c.l.b16 %v83
    %v122 = vpack.c.b16 %v107, %v106
    %v123 = vpack.c.b16 %v109, %v108
    %v124 = vpack.c.b16 %v111, %v110
    %v125 = vpack.c.b16 %v113, %v112
    %v126 = vpack.c.b16 %v115, %v114
    %v127 = vpack.c.b16 %v117, %v116
    %v128 = vpack.c.b16 %v119, %v118
    %v129 = vpack.c.b16 %v121, %v120
    %138 = vmatprep.subr.bf16.mxu0 0
    %139 = vmatpush1.bf16.msra.mxu0 %v122
    %140 = vmatprep.subr.bf16.mxu0 0
    %141 = vmatpush1.bf16.msra.mxu0 %v123
    %142 = vmatprep.subr.bf16.mxu0 0
    %143 = vmatpush1.bf16.msra.mxu0 %v124
    %144 = vmatprep.subr.bf16.mxu0 0
    %145 = vmatpush1.bf16.msra.mxu0 %v125
    %146 = vmatprep.subr.bf16.mxu0 0
    %147 = vmatpush1.bf16.msra.mxu0 %v126
    %148 = vmatprep.subr.bf16.mxu0 0
    %149 = vmatpush1.bf16.msra.mxu0 %v127
    %150 = vmatprep.subr.bf16.mxu0 0
    %151 = vmatpush1.bf16.msra.mxu0 %v128
    %152 = vmatprep.subr.bf16.mxu0 0
    %153 = vmatpush1.bf16.msra.mxu0 %v129
    %154 = vmatprep.subr.bf16.mxu0 0
    %155 = vmatpush1.bf16.msra.mxu0 0
    %156 = vmatprep.subr.bf16.mxu0 0
    %157 = vmatpush1.bf16.msra.mxu0 0
    %158 = vmatprep.subr.bf16.mxu0 0
    %159 = vmatpush1.bf16.msra.mxu0 0
    %160 = vmatprep.subr.bf16.mxu0 0
    %161 = vmatpush1.bf16.msra.mxu0 0
    %162 = vmatprep.subr.bf16.mxu0 0
    %163 = vmatpush1.bf16.msra.mxu0 0
    %164 = vmatprep.subr.bf16.mxu0 0
    %165 = vmatpush1.bf16.msra.mxu0 0
    %166 = vmatprep.subr.bf16.mxu0 0
    %167 = vmatpush1.bf16.msra.mxu0 0
    %168 = vmatprep.subr.bf16.mxu0 0
    %169 = vmatpush1.bf16.msra.mxu0 0
    %170 = vmatprep.mubr.bf16.mxu0 0
    %171 = vmatmul.mubr.bf16.gmra.mrb[0].mxu0 %v88
    %v172 = vpop.f32.mrb[0].mxu0
    %v173 = vadd.f32 0.0, %v172
    %v174 = vpop.f32.mrb[0].mxu0
    %v175 = vpop.f32.mrb[0].mxu0
    %v176 = vadd.f32 0.0, %v175
    %v177 = vpop.f32.mrb[0].mxu0
    %178 = vdwg.mxu0
    %v179 = vadd.f32 %v173, %v176
    %v180 = vrot.slane %v179, 4
    %v181 = vadd.f32 %v179, %v180
    %v182 = vrot.slane %v181, 2
    %v183 = vadd.f32 %v181, %v182
    %v184 = vrot.slane %v183, 1
    %v185 = vadd.f32 %v183, %v184
    %v186 = vmul.f32 %v185, 0.125
    %v187 = vmul.f32 %v173, %v173
    %v188 = vmul.f32 %v176, %v176
    %v189 = vadd.f32 %v187, %v188
    %v190 = vrot.slane %v189, 4
    %v191 = vadd.f32 %v189, %v190
    %v192 = vrot.slane %v191, 2
    %v193 = vadd.f32 %v191, %v192
    %v194 = vrot.slane %v193, 1
    %v195 = vadd.f32 %v193, %v194
    %v196 = vmul.f32 %v195, 0.125
    %v197 = vmul.f32 %v186, %v186
    %v198 = vsub.f32 %v196, %v197
    %v199 = vmax.f32 %v198, 0.0
    %v200 = vld [vmem:[%s2] sm:$0x1]
    %v201 = vadd.f32 %v199, 1e-05
    %v202 = vrsqrt.pop %v201
    %v203 = vmul.f32 %v200, %v202
    %v204 = vld [vmem:[%s3] sm:$0x1]
    %v205 = vmul.f32 %v186, %v203
    %v206 = vsub.f32 %v204, %v205
    %v208 = vlaneseq
    %v209 = vshrl.u32 %v208, 7
    %v210 = vsub.s32 0, %v209
    %v211 = vrot.slane %v203, %v210
    %v213 = vmul.f32 %v173, %v211
    %v214 = vmul.f32 %v176, %v211
    %v216 = vlaneseq
    %v217 = vshrl.u32 %v216, 7
    %v218 = vsub.s32 0, %v217
    %v219 = vrot.slane %v206, %v218
    %v221 = vadd.f32 %v213, %v219
    %v222 = vadd.f32 %v214, %v219
    %v223 = vmax.f32 %v221, 0.0
    %v224 = vmax.f32 %v222, 0.0
    %v225 = vlaneseq
    %v226 = vshrl.u32 %v225, 7
    %v227 = vadd.s32 %v226, 8
    %v228 = vlaneseq
    %v229 = vand.u32 %v228, 127
    %v230 = vmul.u32 %v226, 2654435761
    %v231 = vmul.u32 %v227, 2654435761
    %v232 = vmul.u32 %v229, 2246822519
    %v233 = vxor.u32 %v230, %v232
    %v234 = vxor.u32 %v231, %v232
    %v235 = vadd.s32 %v233, 1234
    %v236 = vadd.s32 %v234, 1234
    %v237 = vshrl.u32 %v235, 16
    %v238 = vshrl.u32 %v236, 16
    %v239 = vxor.u32 %v235, %v237
    %v240 = vxor.u32 %v236, %v238
    %v241 = vmul.u32 %v239, 2146121005
    %v242 = vmul.u32 %v240, 2146121005
    %v243 = vshrl.u32 %v241, 15
    %v244 = vshrl.u32 %v242, 15
    %v245 = vxor.u32 %v241, %v243
    %v246 = vxor.u32 %v242, %v244
    %v247 = vmul.u32 %v245, 2221713035
    %v248 = vmul.u32 %v246, 2221713035
    %v249 = vshrl.u32 %v247, 16
    %v250 = vshrl.u32 %v248, 16
    %v251 = vxor.u32 %v247, %v249
    %v252 = vxor.u32 %v248, %v250
    %vm253 = vcmp.ge.u32.totalorder %v251, 1073741824
    %vm254 = vcmp.ge.u32.totalorder %v252, 1073741824
    %v255 = vsel %vm253, %v223, 0.0
    %v256 = vsel %vm254, %v224, 0.0
    %v257 = vpack.c.bf16 %v256, %v255
    %v258 = vld [vmem:[#allocation7] sm:$0xf]
    %v259 = vld [vmem:[#allocation7 + $0x4] sm:$0xf]
    %v260 = vld [vmem:[#allocation7 + $0x8] sm:$0xf]
    %v261 = vld [vmem:[#allocation7 + $0xc] sm:$0xf]
    %v262 = vld [vmem:[#allocation7 + $0x10] sm:$0xf]
    %v263 = vld [vmem:[#allocation7 + $0x14] sm:$0xf]
    %v264 = vld [vmem:[#allocation7 + $0x18] sm:$0xf]
    %v265 = vld [vmem:[#allocation7 + $0x1c] sm:$0xf]
    %v266 = vld [vmem:[#allocation7 + $0x20] sm:$0xf]
    %v267 = vld [vmem:[#allocation7 + $0x24] sm:$0xf]
    %v268 = vld [vmem:[#allocation7 + $0x28] sm:$0xf]
    %v269 = vld [vmem:[#allocation7 + $0x2c] sm:$0xf]
    %v270 = vld [vmem:[#allocation7 + $0x30] sm:$0xf]
    %v271 = vld [vmem:[#allocation7 + $0x34] sm:$0xf]
    %v272 = vld [vmem:[#allocation7 + $0x38] sm:$0xf]
    %v273 = vld [vmem:[#allocation7 + $0x3c] sm:$0xf]
    %v274 = vld [vmem:[%s5] sm:$0x1]
    %v276 = vlaneseq
    %v277 = vshrl.u32 %v276, 7
    %v278 = vsub.s32 0, %v277
    %v279 = vrot.slane %v274, %v278
    %v297 = vunpack.c.l.b16 %v258
    %v298 = vunpack.c.l.b16 %v259
    %v299 = vunpack.c.l.b16 %v260
    %v300 = vunpack.c.l.b16 %v261
    %v301 = vunpack.c.l.b16 %v262
    %v302 = vunpack.c.l.b16 %v263
    %v303 = vunpack.c.l.b16 %v264
    %v304 = vunpack.c.l.b16 %v265
    %v305 = vunpack.c.l.b16 %v266
    %v306 = vunpack.c.l.b16 %v267
    %v307 = vunpack.c.l.b16 %v268
    %v308 = vunpack.c.l.b16 %v269
    %v309 = vunpack.c.l.b16 %v270
    %v310 = vunpack.c.l.b16 %v271
    %v311 = vunpack.c.l.b16 %v272
    %v312 = vunpack.c.l.b16 %v273
    %v313 = vpack.c.b16 %v298, %v297
    %v314 = vpack.c.b16 %v300, %v299
    %v315 = vpack.c.b16 %v302, %v301
    %v316 = vpack.c.b16 %v304, %v303
    %v317 = vpack.c.b16 %v306, %v305
    %v318 = vpack.c.b16 %v308, %v307
    %v319 = vpack.c.b16 %v310, %v309
    %v320 = vpack.c.b16 %v312, %v311
    %329 = vmatprep.subr.bf16.mxu0 0
    %330 = vmatpush1.bf16.msra.mxu0 %v313
    %331 = vmatprep.subr.bf16.mxu0 0
    %332 = vmatpush1.bf16.msra.mxu0 %v314
    %333 = vmatprep.subr.bf16.mxu0 0
    %334 = vmatpush1.bf16.msra.mxu0 %v315
    %335 = vmatprep.subr.bf16.mxu0 0
    %336 = vmatpush1.bf16.msra.mxu0 %v316
    %337 = vmatprep.subr.bf16.mxu0 0
    %338 = vmatpush1.bf16.msra.mxu0 %v317
    %339 = vmatprep.subr.bf16.mxu0 0
    %340 = vmatpush1.bf16.msra.mxu0 %v318
    %341 = vmatprep.subr.bf16.mxu0 0
    %342 = vmatpush1.bf16.msra.mxu0 %v319
    %343 = vmatprep.subr.bf16.mxu0 0
    %344 = vmatpush1.bf16.msra.mxu0 %v320
    %345 = vmatprep.subr.bf16.mxu0 0
    %346 = vmatpush1.bf16.msra.mxu0 0
    %347 = vmatprep.subr.bf16.mxu0 0
    %348 = vmatpush1.bf16.msra.mxu0 0
    %349 = vmatprep.subr.bf16.mxu0 0
    %350 = vmatpush1.bf16.msra.mxu0 0
    %351 = vmatprep.subr.bf16.mxu0 0
    %352 = vmatpush1.bf16.msra.mxu0 0
    %353 = vmatprep.subr.bf16.mxu0 0
    %354 = vmatpush1.bf16.msra.mxu0 0
    %355 = vmatprep.subr.bf16.mxu0 0
    %356 = vmatpush1.bf16.msra.mxu0 0
    %357 = vmatprep.subr.bf16.mxu0 0
    %358 = vmatpush1.bf16.msra.mxu0 0
    %359 = vmatprep.subr.bf16.mxu0 0
    %360 = vmatpush1.bf16.msra.mxu0 0
    %361 = vmatprep.mubr.bf16.mxu0 0
    %362 = vmatmul.mubr.bf16.gmra.mrb[0].mxu0 %v257
    %v363 = vpop.f32.mrb[0].mxu0
    %v364 = vadd.f32 %v279, %v363
    %v365 = vpop.f32.mrb[0].mxu0
    %v366 = vpop.f32.mrb[0].mxu0
    %v367 = vadd.f32 %v279, %v366
    %v368 = vpop.f32.mrb[0].mxu0
    %369 = vdwg.mxu0
    %370 = vst [vmem:[#allocation8] sm:$0xff] %v364
    %371 = vst [vmem:[#allocation8 + $0x8] sm:$0xff] %v367
    // Predicated region
    $region38: #{tpu_custom_call.1} parent=1 // pred_check
      _
    $region39: #{tpu_custom_call.1} parent=1 // pred_check_branch
      %373 = sbr.rel (0) target = $region41
    $region40: #{tpu_custom_call.1} parent=1 // pred_region
      %s375 = ssub.s32 256, 256
      %376 = vsyncadd [#allocation4], %s375
      %s377 = sshll.u32 [#allocation8], 4
      %s378 = int_to_ptr.vmem [resolvable:$true] %s377
      %383 = dma.vmem_to_hbm [thread:$0]  %s378, 256, %s6, [#allocation4], 128, 128, 8
    $region41: #{tpu_custom_call.1} parent=1 // pred_fallthru
      _
    // Predicated region
    $region42: #{tpu_custom_call.1} parent=1 // pred_check
      _
    $region43: #{tpu_custom_call.1} parent=1 // pred_check_branch
      %385 = sbr.rel (0) target = $region45
    $region44: #{tpu_custom_call.1} parent=1 // pred_region
      %386 = dma.done [#allocation4], 256
    $region45: #{tpu_custom_call.1} parent=1 // pred_fallthru
      _
    %387 = vsyncpa [#allocation3], 1
    %388 = vsyncpa [#allocation6], 1
    %389 = vsyncpa [#allocation4], 1

</llo_original>
